<compile_context>
chip_gen: v7x
topology: tpu7x:2x2x1
jax: 0.10.0
libtpu: 0.0.40
codegen_flags: <defaults>
</compile_context>

<pallas_src>
import functools

import jax
import jax.numpy as jnp
from jax import lax
from jax.experimental import pallas as pl
from jax.experimental.pallas import tpu as pltpu


# ----------------------------------------------------------------------------
# Kernels
# ----------------------------------------------------------------------------
def _adain_kernel(x_ref, gb_ref, o_ref, *, eps, hw):
    """Fused one-pass adaIN over full rows.

    x_ref:  (R_TILE, H*W) tile -- each row is one (n, c) instance.
    gb_ref: (R_TILE, 2) float32 -- column 0 = gamma, column 1 = beta.
    """
    x = x_ref[...].astype(jnp.float32)

    # Single sweep over x: sum and sum-of-squares (VPU), row reduction (XLU).
    s = jnp.sum(x, axis=-1, keepdims=True)
    sq = jnp.sum(x * x, axis=-1, keepdims=True)

    mean = s * (1.0 / hw)
    # torch.var default: unbiased (divide by HW - 1).  HW == 1 -> NaN (torch too).
    var = (sq - hw * (mean * mean)) * (1.0 / (hw - 1.0))
    inv_std = lax.rsqrt(var + eps)

    scale = inv_std * gb_ref[:, 0:1]           # (R_TILE, 1) f32
    shift = gb_ref[:, 1:2] - mean * scale      # (R_TILE, 1) f32
    o_ref[...] = (x * scale + shift).astype(o_ref.dtype)


def _adain_kernel_hw_tiled(x_ref, gb_ref, o_ref, sum_ref, sq_ref, *, eps, hw,
                           hw_blocks, hw_tile):
    """HW-tiled fallback for rows too large to fit VMEM in one block.

    Inner grid axis has length 2 * hw_blocks:
      t in [0, hw_blocks)           : accumulate per-row sum / sum-of-squares.
      t == hw_blocks - 1            : finalize -> store (scale, shift) in scratch.
      t in [hw_blocks, 2*hw_blocks) : re-read chunk (t - hw_blocks), normalize.
    """
    t = pl.program_id(1)
    x = x_ref[...].astype(jnp.float32)

    @pl.when(t == 0)
    def _():
        sum_ref[...] = jnp.zeros_like(sum_ref)
        sq_ref[...] = jnp.zeros_like(sq_ref)

    @pl.when(t < hw_blocks)
    def _():
        # Mask lanes past HW in the (possibly partial) last spatial chunk so
        # garbage data never enters the row statistics.
        col = t * hw_tile + lax.broadcasted_iota(jnp.int32, x.shape, 1)
        xm = jnp.where(col < hw, x, 0.0)
        sum_ref[...] += jnp.sum(xm, axis=-1, keepdims=True)
        sq_ref[...] += jnp.sum(xm * xm, axis=-1, keepdims=True)

    @pl.when(t == hw_blocks - 1)
    def _():
        mean = sum_ref[...] * (1.0 / hw)
        var = (sq_ref[...] - hw * (mean * mean)) * (1.0 / (hw - 1.0))
        inv_std = lax.rsqrt(var + eps)
        scale = inv_std * gb_ref[:, 0:1]
        # Reuse the accumulators to carry (scale, shift) into the second pass.
        sum_ref[...] = scale
        sq_ref[...] = gb_ref[:, 1:2] - mean * scale

    @pl.when(t >= hw_blocks)
    def _():
        o_ref[...] = (x * sum_ref[...] + sq_ref[...]).astype(o_ref.dtype)


# ----------------------------------------------------------------------------
# Wrapper
# ----------------------------------------------------------------------------
def _vmem_budget():
    """(vmem_limit_bytes, working_set_budget_bytes) for this chip generation."""
    try:
        info = pltpu.get_tpu_info()
        phys = int(getattr(info, "vmem_capacity_bytes", 64 * 1024 * 1024))
    except Exception:  # pragma: no cover - conservative fallback
        phys = 64 * 1024 * 1024
    # v5e/v6e (128 MiB) -> 96 MiB scoped limit; v7x (64 MiB/TC) -> 48 MiB.
    limit = min(max((phys * 3) // 4, 32 * 1024 * 1024), 96 * 1024 * 1024)
    budget = (limit * 2) // 3      # headroom for pipeline buffers / scratch
    return limit, budget


def adain(x, gamma, beta, eps=1e-5, row_tile=None, hw_tile=None):
    """x: (N, C, H, W); gamma, beta: (N, C).  Returns (N, C, H, W)."""
    N, C, H, W = x.shape
    R = N * C
    HW = H * W
    itemsize = jnp.dtype(x.dtype).itemsize
    # Sublane packing: rows per packed sublane group (8 f32, 16 bf16, 32 int8).
    packing = max(8, 32 // itemsize)

    x2 = x.reshape(R, HW)
    # gamma/beta stay in float32 (no precision round-trip for bf16 inputs);
    # stacked into one (R, 2) array -> a single tiny DMA per grid step.
    gb = jnp.stack(
        [gamma.reshape(R).astype(jnp.float32),
         beta.reshape(R).astype(jnp.float32)], axis=-1)

    vmem_limit, budget = _vmem_budget()

    # Per-row working set of the fused-row kernel:
    #   2x input tile (double buffer) + 2x output tile + ~2 full-tile f32 temps.
    bytes_per_row = HW * (4 * itemsize + 2 * 4)
    use_hw_tiling = (hw_tile is not None) or (bytes_per_row * packing > budget)

    if not use_hw_tiling:
        # -------- fused-row path (one block covers full H*W per instance) ----
        if row_tile is not None:
            r_tile = int(row_tile)
        else:
            r_tile = budget // bytes_per_row
        r_tile = max(packing, (r_tile // packing) * packing)
        if r_tile >= R:
            r_tile = R
        if row_tile is None:
            # Prefer a few grid steps (pipelining; v7x 2-TC sharding) while the
            # input block stays >= ~512 KiB.
            while (r_tile > packing and pl.cdiv(R, r_tile) < 4
                   and (r_tile // 2) * HW * itemsize >= (512 * 1024)):
                r_tile = max(packing, ((r_tile // 2) // packing) * packing)

        grid = (pl.cdiv(R, r_tile),)   # partial last block handled by Pallas
        kernel = functools.partial(_adain_kernel, eps=float(eps), hw=HW)
        x_spec = pl.BlockSpec((r_tile, HW), lambda i: (i, 0))
        gb_spec = pl.BlockSpec((r_tile, 2), lambda i: (i, 0))
        o_spec = pl.BlockSpec((r_tile, HW), lambda i: (i, 0))

        out = pl.pallas_call(
            kernel,
            out_shape=jax.ShapeDtypeStruct((R, HW), x.dtype),
            grid=grid,
            in_specs=[x_spec, gb_spec],
            out_specs=o_spec,
            compiler_params=pltpu.CompilerParams(
                dimension_semantics=("parallel",),
                vmem_limit_bytes=vmem_limit,
            ),
            cost_estimate=pl.CostEstimate(
                flops=7 * R * HW,
                transcendentals=R,
                bytes_accessed=2 * R * HW * itemsize + 8 * R,
            ),
        )(x2, gb)
        return out.reshape(N, C, H, W)

    # -------- HW-tiled fallback (rows too wide for VMEM at min row tile) -----
    if row_tile is not None:
        r_tile = max(packing, (int(row_tile) // packing) * packing)
    else:
        r_tile = packing
    if r_tile >= R:
        r_tile = R

    fb_bytes_per_col = r_tile * (4 * itemsize + 2 * 4)
    if hw_tile is None:
        hw_tile = budget // max(1, fb_bytes_per_col)
    hw_tile = max(128, (int(hw_tile) // 128) * 128)
    hw_tile = min(hw_tile, pl.cdiv(HW, 128) * 128)
    hw_blocks = pl.cdiv(HW, hw_tile)

    grid = (pl.cdiv(R, r_tile), 2 * hw_blocks)
    kernel = functools.partial(
        _adain_kernel_hw_tiled, eps=float(eps), hw=HW,
        hw_blocks=hw_blocks, hw_tile=hw_tile)

    x_spec = pl.BlockSpec(
        (r_tile, hw_tile),
        lambda i, t: (i, jnp.where(t >= hw_blocks, t - hw_blocks, t)))
    gb_spec = pl.BlockSpec((r_tile, 2), lambda i, t: (i, 0))
    # During pass 0 the output block index stays constant -> stays resident
    # (no writeback); pass 1 writes each chunk exactly once.
    o_spec = pl.BlockSpec(
        (r_tile, hw_tile), lambda i, t: (i, jnp.maximum(t - hw_blocks, 0)))

    out = pl.pallas_call(
        kernel,
        out_shape=jax.ShapeDtypeStruct((R, HW), x.dtype),
        grid=grid,
        in_specs=[x_spec, gb_spec],
        out_specs=o_spec,
        scratch_shapes=[pltpu.VMEM((r_tile, 1), jnp.float32),
                        pltpu.VMEM((r_tile, 1), jnp.float32)],
        compiler_params=pltpu.CompilerParams(
            dimension_semantics=("parallel", "arbitrary"),
            vmem_limit_bytes=vmem_limit,
        ),
        cost_estimate=pl.CostEstimate(
            flops=9 * R * HW,
            transcendentals=R,
            bytes_accessed=3 * R * HW * itemsize + 8 * R,
        ),
    )(x2, gb)
    return out.reshape(N, C, H, W)


# ----------------------------------------------------------------------------
# Pure-JAX reference (matches the PyTorch module)
# ----------------------------------------------------------------------------
def _adain_ref(x, gamma, beta, eps=1e-5):
    mean = jnp.mean(x, axis=(2, 3), keepdims=True)
    var = jnp.var(x, axis=(2, 3), keepdims=True, ddof=1)   # unbiased (torch.var)
    out = (x - mean) / jnp.sqrt(var + eps)
    return out * gamma[:, :, None, None] + beta[:, :, None, None]


if __name__ == "__main__":
    keys = jax.random.split(jax.random.PRNGKey(0), 9)

    # Primary test: module-consistent small shape (single fused-row block).
    N, C, H, W = 2, 4, 16, 16
    x = jax.random.normal(keys[0], (N, C, H, W), dtype=jnp.float32)
    gamma = jax.random.normal(keys[1], (N, C), dtype=jnp.float32) + 1.0
    beta = jax.random.normal(keys[2], (N, C), dtype=jnp.float32)
    out = jax.block_until_ready(adain(x, gamma, beta))
    ref = _adain_ref(x, gamma, beta)
    assert out.shape == (N, C, H, W)
    assert jnp.allclose(out, ref, atol=1e-4, rtol=1e-4), "mismatch (fused path)"

    # Multi-step grid with a partial (non-divisible) last row block, no padding.
    N2, C2, H2, W2 = 3, 5, 8, 16   # R = 15, row_tile = 8 -> 2 grid steps
    x_b = jax.random.normal(keys[3], (N2, C2, H2, W2), dtype=jnp.float32)
    g_b = jax.random.normal(keys[4], (N2, C2), dtype=jnp.float32) + 1.0
    b_b = jax.random.normal(keys[5], (N2, C2), dtype=jnp.float32)
    out_b = jax.block_until_ready(adain(x_b, g_b, b_b, row_tile=8))
    assert jnp.allclose(out_b, _adain_ref(x_b, g_b, b_b),
                        atol=1e-4, rtol=1e-4), "mismatch (partial row block)"

    # HW-tiled fallback path (forced small hw_tile; partial last spatial chunk).
    N3, C3, H3, W3 = 1, 3, 16, 20  # HW = 320 -> 128-wide chunks, last partial
    x_c = jax.random.normal(keys[6], (N3, C3, H3, W3), dtype=jnp.float32)
    g_c = jax.random.normal(keys[7], (N3, C3), dtype=jnp.float32) + 1.0
    b_c = jax.random.normal(keys[8], (N3, C3), dtype=jnp.float32)
    out_c = jax.block_until_ready(adain(x_c, g_c, b_c, hw_tile=128))
    assert jnp.allclose(out_c, _adain_ref(x_c, g_c, b_c),
                        atol=1e-4, rtol=1e-4), "mismatch (HW-tiled fallback)"

    print("KERNEL_OK")
</pallas_src>

<mosaic_0001>
module attributes {stable_mosaic.version = 11 : i64} {
  func.func @_adain_kernel(%arg0: i32, %arg1: memref<8x256xf32, #tpu.memory_space<vmem>>, %arg2: memref<8x2xf32, #tpu.memory_space<vmem>>, %arg3: memref<8x256xf32, #tpu.memory_space<vmem>>) attributes {dimension_semantics = [#tpu.dimension_semantics<parallel>], iteration_bounds = array<i64: 1>, scalar_prefetch = 0 : i64, scratch_operands = 0 : i64, tpu.core_type = #tpu.core_type<tc>, window_params = [{transform_indices = @transform_0, window_bounds = array<i64: 8, 256>}, {transform_indices = @transform_1, window_bounds = array<i64: 8, 2>}, {transform_indices = @transform_2, window_bounds = array<i64: 8, 256>}]} {
    %c0 = arith.constant 0 : index
    %c0_0 = arith.constant 0 : index
    %0 = vector.load %arg1[%c0, %c0_0] : memref<8x256xf32, #tpu.memory_space<vmem>>, vector<8x256xf32>
    %cst = arith.constant dense<0.000000e+00> : vector<8xf32>
    %1 = vector.multi_reduction <add>, %0, %cst [1] : vector<8x256xf32> to vector<8xf32>
    %2 = vector.shape_cast %1 : vector<8xf32> to vector<8x1xf32>
    %3 = arith.mulf %0, %0 : vector<8x256xf32>
    %cst_1 = arith.constant dense<0.000000e+00> : vector<8xf32>
    %4 = vector.multi_reduction <add>, %3, %cst_1 [1] : vector<8x256xf32> to vector<8xf32>
    %5 = vector.shape_cast %4 : vector<8xf32> to vector<8x1xf32>
    %cst_2 = arith.constant 3.906250e-03 : f32
    %6 = vector.broadcast %cst_2 : f32 to vector<8x1xf32>
    %7 = arith.mulf %2, %6 : vector<8x1xf32>
    %8 = arith.mulf %7, %7 : vector<8x1xf32>
    %cst_3 = arith.constant 2.560000e+02 : f32
    %9 = vector.broadcast %cst_3 : f32 to vector<8x1xf32>
    %10 = arith.mulf %9, %8 : vector<8x1xf32>
    %11 = arith.subf %5, %10 : vector<8x1xf32>
    %cst_4 = arith.constant 0.00392156886 : f32
    %12 = vector.broadcast %cst_4 : f32 to vector<8x1xf32>
    %13 = arith.mulf %11, %12 : vector<8x1xf32>
    %cst_5 = arith.constant 9.99999974E-6 : f32
    %14 = vector.broadcast %cst_5 : f32 to vector<8x1xf32>
    %15 = arith.addf %13, %14 : vector<8x1xf32>
    %16 = math.rsqrt %15 : vector<8x1xf32>
    %c0_6 = arith.constant 0 : index
    %c0_7 = arith.constant 0 : index
    %17 = vector.load %arg2[%c0_6, %c0_7] : memref<8x2xf32, #tpu.memory_space<vmem>>, vector<8x1xf32>
    %18 = arith.mulf %16, %17 : vector<8x1xf32>
    %c0_8 = arith.constant 0 : index
    %c1 = arith.constant 1 : index
    %19 = vector.load %arg2[%c0_8, %c1] : memref<8x2xf32, #tpu.memory_space<vmem>>, vector<8x1xf32>
    %20 = arith.mulf %7, %18 : vector<8x1xf32>
    %21 = arith.subf %19, %20 : vector<8x1xf32>
    %22 = vector.broadcast %18 : vector<8x1xf32> to vector<8x256xf32>
    %23 = arith.mulf %0, %22 : vector<8x256xf32>
    %24 = vector.broadcast %21 : vector<8x1xf32> to vector<8x256xf32>
    %25 = arith.addf %23, %24 : vector<8x256xf32>
    %c0_9 = arith.constant 0 : index
    %c0_10 = arith.constant 0 : index
    %26 = vector.load %arg3[%c0_9, %c0_10] : memref<8x256xf32, #tpu.memory_space<vmem>>, vector<8x256xf32>
    tpu.vector_store %arg3[%c0_9, %c0_10], %25 {strides = array<i32>} : memref<8x256xf32, #tpu.memory_space<vmem>>, vector<8x256xf32>,
    return
  }
  func.func @transform_0(%arg0: i32) -> (i32, i32) {
    %c0_i32 = arith.constant 0 : i32
    %c0_i32_0 = arith.constant 0 : i32
    return %arg0, %c0_i32 : i32, i32
  }
  func.func @transform_1(%arg0: i32) -> (i32, i32) {
    %c0_i32 = arith.constant 0 : i32
    %c0_i32_0 = arith.constant 0 : i32
    return %arg0, %c0_i32 : i32, i32
  }
  func.func @transform_2(%arg0: i32) -> (i32, i32) {
    %c0_i32 = arith.constant 0 : i32
    %c0_i32_0 = arith.constant 0 : i32
    return %arg0, %c0_i32 : i32, i32
  }
}

</mosaic_0001>

<llo_original>
// kernel: tpu_custom_call.1
$region0: #{tpu_custom_call.1}
  #allocation0 [shape = 'u32[]', space=smem, size = 0x4, offset = 0x4, fixed_abs, tag = 'smem constant byte address 0x4 - core index']
  #allocation1 [shape = 'u32[144,128]{1,0:T(1,128)}', space=vmem, size = 0x12000, scoped, tag = 'internal scratch']
  %s0 = inlined_call_operand.hbm [shape: f32[8,256], index: 0, kind: input, shape index: {}]
  %s1 = inlined_call_operand.vmem [shape: f32[8,2], index: 1, kind: input, shape index: {}]
  %s2 = inlined_call_operand.hbm [shape: f32[8,256], index: 2, kind: output, shape index: {}]
  %s3 = sld [smem:[#allocation0]]
  $region22: #{tpu_custom_call.1} parent=0
    _
  %s5 = ssub.s32 1, %s3
  %s6 = scalar_select 0, %s5, %s3
  $region1: #{tpu_custom_call.1} parent=0
    #allocation2 [shape = 'u8[8192]{0}', space=vmem, size = 0x2000, scoped, tag = 'input window, operand 0, single buffered']
    #allocation3 [shape = 's32[1]{0}', space=sflag, size = 0x4, scoped, tag = 'scoped memory for tpu_custom_call.1']
    #allocation4 [shape = 's32[1]{0}', space=sflag, size = 0x4, scoped, tag = 'scoped memory for tpu_custom_call.1']
    #allocation5 [shape = 'u8[8192]{0}', space=vmem, size = 0x2000, scoped, tag = 'output window, operand 0, single buffered']
    %7 = vsyncpa [#allocation3], 0
    %8 = vsyncpa [#allocation4], 0
    // Predicated region
    $region2: #{tpu_custom_call.1} parent=1 // pred_check
      _
    $region3: #{tpu_custom_call.1} parent=1 // pred_check_branch
      %10 = sbr.rel (0) target = $region5
    $region4: #{tpu_custom_call.1} parent=1 // pred_region
      %s12 = ssub.s32 256, 256
      %13 = vsyncadd [#allocation3], %s12
      %s15 = sshll.u32 [#allocation2], 4
      %s16 = int_to_ptr.vmem [resolvable:$true] %s15
      %18 = dma.hbm_to_vmem [thread:$0]  %s0, 256, %s16, [#allocation3]
    $region5: #{tpu_custom_call.1} parent=1 // pred_fallthru
      _
    // Predicated region
    $region6: #{tpu_custom_call.1} parent=1 // pred_check
      _
    $region7: #{tpu_custom_call.1} parent=1 // pred_check_branch
      %20 = sbr.rel (0) target = $region9
    $region8: #{tpu_custom_call.1} parent=1 // pred_region
      _
    $region9: #{tpu_custom_call.1} parent=1 // pred_fallthru
      _
    // Predicated region
    $region10: #{tpu_custom_call.1} parent=1 // pred_check
      _
    $region11: #{tpu_custom_call.1} parent=1 // pred_check_branch
      %22 = sbr.rel (0) target = $region13
    $region12: #{tpu_custom_call.1} parent=1 // pred_region
      %23 = dma.done [#allocation3], 256
    $region13: #{tpu_custom_call.1} parent=1 // pred_fallthru
      _
    %v24 = vld [vmem:[#allocation2] sm:$0xff]
    %v25 = vld [vmem:[#allocation2 + $0x8] sm:$0xff]
    %v26 = vadd.f32 %v24, %v25
    %27 = vadd.xlane.f32.xlu0 %v26
    %v28 = vpop.xlane.xlu0 %27
    %v29 = vmul.f32 %v24, %v24
    %v30 = vmul.f32 %v25, %v25
    %v31 = vadd.f32 %v29, %v30
    %32 = vadd.xlane.f32.xlu0 %v31
    %v33 = vpop.xlane.xlu0 %32
    %v34 = vmul.f32 %v28, 0.00390625
    %v35 = vmul.f32 %v34, %v34
    %v36 = vmul.f32 %v35, 256.0
    %v37 = vsub.f32 %v33, %v36
    %v38 = vmul.f32 %v37, 0.003921569
    %v39 = vadd.f32 %v38, 1e-05
    %v40 = vrsqrt.pop %v39
    %v41 = vld [vmem:[%s1] sm:$0xff]
    %v42 = vmul.f32 %v40, %v41
    %v43 = vmul.f32 %v34, %v42
    %45 = vrot.lane.b32.xlu0 %v43, 1
    %v46 = vpop.permute.xlu0 %45
    %v48 = vsub.f32 %v41, %v46
    %50 = vset.pattern.permute.xlu0 0
    %51 = vperm.xlu0 %50, %v42
    %v52 = vpop.permute.xlu0 %51
    %v54 = vmul.f32 %v24, %v52
    %v55 = vmul.f32 %v25, %v52
    %57 = vset.pattern.permute.xlu0 1
    %58 = vperm.xlu0 %57, %v48
    %v59 = vpop.permute.xlu0 %58
    %v61 = vadd.f32 %v54, %v59
    %v62 = vadd.f32 %v55, %v59
    %63 = vst [vmem:[#allocation5] sm:$0xff] %v61
    %64 = vst [vmem:[#allocation5 + $0x8] sm:$0xff] %v62
    // Predicated region
    $region14: #{tpu_custom_call.1} parent=1 // pred_check
      _
    $region15: #{tpu_custom_call.1} parent=1 // pred_check_branch
      %66 = sbr.rel (0) target = $region17
    $region16: #{tpu_custom_call.1} parent=1 // pred_region
      %s68 = ssub.s32 256, 256
      %69 = vsyncadd [#allocation4], %s68
      %s71 = sshll.u32 [#allocation5], 4
      %s72 = int_to_ptr.vmem [resolvable:$true] %s71
      %74 = dma.vmem_to_hbm [thread:$0]  %s72, 256, %s2, [#allocation4]
    $region17: #{tpu_custom_call.1} parent=1 // pred_fallthru
      _
    // Predicated region
    $region18: #{tpu_custom_call.1} parent=1 // pred_check
      _
    $region19: #{tpu_custom_call.1} parent=1 // pred_check_branch
      %76 = sbr.rel (0) target = $region21
    $region20: #{tpu_custom_call.1} parent=1 // pred_region
      %77 = dma.done [#allocation4], 256
    $region21: #{tpu_custom_call.1} parent=1 // pred_fallthru
      _
    %78 = vsyncpa [#allocation3], 1
    %79 = vsyncpa [#allocation4], 1

</llo_original>
